<compile_context>
chip_gen: v6e
topology: v6e:2x2x1
jax: 0.10.0
libtpu: 0.0.40
codegen_flags: <defaults>
</compile_context>

<pallas_src>
import jax
import jax.numpy as jnp
from jax.experimental import pallas as pl
from jax.experimental.pallas import tpu as pltpu

H1 = 256
H2 = 128


def _discriminator_kernel(x_ref, w1_ref, b1_ref, w2_ref, b2_ref,
                          w3_ref, b3_ref, out_ref):
    # x arrives as f32 straight from HBM; cast to bf16 in-kernel for the MXU.
    x = x_ref[...].astype(jnp.bfloat16)                        # (TB, D)

    # Linear 1 (MXU, bf16 in / f32 acc) + bias + LeakyReLU(0.2).
    h1 = jnp.dot(x, w1_ref[...], preferred_element_type=jnp.float32)
    h1 = h1 + b1_ref[...]                                      # (TB, 256) f32
    h1 = jnp.maximum(h1, 0.2 * h1)

    # Linear 2 (MXU) + Dropout(0.05) + LeakyReLU(0.2).
    h2 = jnp.dot(h1.astype(jnp.bfloat16), w2_ref[...],
                 preferred_element_type=jnp.float32)
    h2 = h2 + b2_ref[...]                                      # (TB, 128) f32
    # TODO(synk): Dropout(p=0.05) is identity in eval mode; train-mode masking
    # (pltpu.prng_seed / prng_random_bits + 1/(1-p) scale) not implemented.
    h2 = jnp.maximum(h2, 0.2 * h2)

    # Linear 3 (128 -> 1): VPU multiply + lane reduction (keeps MXU free).
    logits = jnp.sum(h2 * w3_ref[...], axis=-1, keepdims=True) + b3_ref[...]

    # Sigmoid via tanh (EUP), numerically safe for large |logits|.
    out_ref[...] = 0.5 * (jnp.tanh(0.5 * logits) + 1.0)


def _choose_tile_b(B, D):
    """VMEM-budgeted batch tile, valid on v5e/v6e/v7x."""
    # Per-row steady-state VMEM bytes:
    #   x double-buffer (f32)                 : 2 * D * 4
    #   output double-buffer (lane-padded 128): 2 * 128 * 4
    #   intermediates h1(f32)+h1(bf16)+h2(f32): 4*H1 + 2*H1 + 4*H2
    per_row = 8 * D + 1024 + 6 * H1 + 4 * H2
    budget = 10 * 1024 * 1024          # fits v5e's 16 MiB scoped VMEM default
    tile = budget // per_row
    tile = min(tile, 2048)             # diminishing returns past ~1-2K rows
    if B >= 1024:
        tile = min(tile, pl.cdiv(B, 2))   # >=2 grid steps -> v7x 2-TC sharding
    tile = max(256, (tile // 256) * 256)
    tile = min(tile, 256 * pl.cdiv(B, 256))   # don't exceed (padded) batch
    # TODO(synk): for very large input_dim (>= ~8K) a K grid axis with a VMEM
    # accumulator (or pl.Buffered(1) on the weight specs) would be needed to
    # stay inside v7x's 64 MiB VMEM; not required for typical tabular dims.
    return tile


@jax.jit
def discriminator_forward(x, params):
    """x: (B, input_dim) float32.  params: dict of w1,b1,w2,b2,w3,b3."""
    B, D = x.shape
    tile_b = _choose_tile_b(B, D)
    n_tiles = pl.cdiv(B, tile_b)

    x_f32 = x.astype(jnp.float32)                              # no pad, no copy
    w1 = params["w1"].astype(jnp.bfloat16)                     # (D, 256)
    b1 = params["b1"].reshape(1, H1).astype(jnp.float32)
    w2 = params["w2"].astype(jnp.bfloat16)                     # (256, 128)
    b2 = params["b2"].reshape(1, H2).astype(jnp.float32)
    w3 = params["w3"].reshape(1, H2).astype(jnp.float32)       # (1, 128)
    b3 = params["b3"].reshape(1, 1).astype(jnp.float32)

    cost = pl.CostEstimate(
        flops=2 * B * (D * H1 + H1 * H2 + H2),
        transcendentals=B,
        bytes_accessed=(B * D * 4 + B * 4
                        + (D * H1 + H1 * H2 + H2) * 2
                        + (H1 + H2 + 1) * 4),
    )

    resident = lambda i: (0, 0)   # weights/biases: same block every grid step
    out = pl.pallas_call(
        _discriminator_kernel,
        out_shape=jax.ShapeDtypeStruct((B, 1), jnp.float32),
        grid=(n_tiles,),
        in_specs=[
            pl.BlockSpec((tile_b, D), lambda i: (i, 0)),       # x (streamed)
            pl.BlockSpec((D, H1), resident),                   # w1
            pl.BlockSpec((1, H1), resident),                   # b1
            pl.BlockSpec((H1, H2), resident),                  # w2
            pl.BlockSpec((1, H2), resident),                   # b2
            pl.BlockSpec((1, H2), resident),                   # w3 (row)
            pl.BlockSpec((1, 1), resident),                    # b3
        ],
        out_specs=pl.BlockSpec((tile_b, 1), lambda i: (i, 0)),
        compiler_params=pltpu.CompilerParams(
            dimension_semantics=("parallel",),
            vmem_limit_bytes=32 * 1024 * 1024),
        cost_estimate=cost,
    )(x_f32, w1, b1, w2, b2, w3, b3)
    return out


def _xavier_uniform(key, fan_in, fan_out):
    # Matches torch.nn.init.xavier_uniform_ bound = sqrt(6 / (fan_in + fan_out)).
    bound = (6.0 / (fan_in + fan_out)) ** 0.5
    # Stored as (in_features, out_features) so the kernel computes x @ W.
    return jax.random.uniform(key, (fan_in, fan_out), jnp.float32,
                              minval=-bound, maxval=bound)


def init_discriminator_params(key, input_dim):
    k1, k2, k3 = jax.random.split(key, 3)
    return {
        "w1": _xavier_uniform(k1, input_dim, H1),
        "b1": jnp.zeros((1, H1), jnp.float32),
        "w2": _xavier_uniform(k2, H1, H2),
        "b2": jnp.zeros((1, H2), jnp.float32),
        "w3": _xavier_uniform(k3, H2, 1),
        "b3": jnp.zeros((1, 1), jnp.float32),
    }


def _reference_forward(x, p):
    # Mirrors the kernel's bf16-input / f32-accumulate matmuls.
    h1 = jnp.dot(x.astype(jnp.bfloat16), p["w1"].astype(jnp.bfloat16),
                 preferred_element_type=jnp.float32) + p["b1"]
    h1 = jnp.maximum(h1, 0.2 * h1)
    h2 = jnp.dot(h1.astype(jnp.bfloat16), p["w2"].astype(jnp.bfloat16),
                 preferred_element_type=jnp.float32) + p["b2"]
    h2 = jnp.maximum(h2, 0.2 * h2)
    logits = h2 @ p["w3"] + p["b3"]
    return jax.nn.sigmoid(logits)


if __name__ == "__main__":
    key = jax.random.PRNGKey(0)
    kx, kp = jax.random.split(key)

    batch, input_dim = 8, 64
    x = jax.random.normal(kx, (batch, input_dim), jnp.float32)
    params = init_discriminator_params(kp, input_dim)

    out = discriminator_forward(x, params)
    out = jax.block_until_ready(out)

    ref = _reference_forward(x, params)
    assert out.shape == (batch, 1)
    assert jnp.allclose(out, ref, atol=2e-3, rtol=2e-3), (
        f"max abs err {jnp.max(jnp.abs(out - ref))}")

    print("KERNEL_OK")
</pallas_src>

<mosaic_0001>
module attributes {stable_mosaic.version = 11 : i64} {
  func.func @_discriminator_kernel(%arg0: i32, %arg1: memref<256x64xf32, #tpu.memory_space<vmem>>, %arg2: memref<64x256xbf16, #tpu.memory_space<vmem>>, %arg3: memref<1x256xf32, #tpu.memory_space<vmem>>, %arg4: memref<256x128xbf16, #tpu.memory_space<vmem>>, %arg5: memref<1x128xf32, #tpu.memory_space<vmem>>, %arg6: memref<1x128xf32, #tpu.memory_space<vmem>>, %arg7: memref<1x1xf32, #tpu.memory_space<vmem>>, %arg8: memref<256x1xf32, #tpu.memory_space<vmem>>) attributes {dimension_semantics = [#tpu.dimension_semantics<parallel>], iteration_bounds = array<i64: 1>, scalar_prefetch = 0 : i64, scratch_operands = 0 : i64, tpu.core_type = #tpu.core_type<tc>, window_params = [{transform_indices = @transform_0, window_bounds = array<i64: 256, 64>}, {pipeline_mode = #tpu.pipeline_mode<synchronous>, transform_indices = @transform_1, window_bounds = array<i64: 64, 256>}, {pipeline_mode = #tpu.pipeline_mode<synchronous>, transform_indices = @transform_2, window_bounds = array<i64: 1, 256>}, {pipeline_mode = #tpu.pipeline_mode<synchronous>, transform_indices = @transform_3, window_bounds = array<i64: 256, 128>}, {pipeline_mode = #tpu.pipeline_mode<synchronous>, transform_indices = @transform_4, window_bounds = array<i64: 1, 128>}, {pipeline_mode = #tpu.pipeline_mode<synchronous>, transform_indices = @transform_5, window_bounds = array<i64: 1, 128>}, {pipeline_mode = #tpu.pipeline_mode<synchronous>, transform_indices = @transform_6, window_bounds = array<i64: 1, 1>}, {transform_indices = @transform_7, window_bounds = array<i64: 256, 1>}]} {
    %c0 = arith.constant 0 : index
    %c0_0 = arith.constant 0 : index
    %0 = vector.load %arg1[%c0, %c0_0] : memref<256x64xf32, #tpu.memory_space<vmem>>, vector<256x64xf32>
    %1 = arith.truncf %0 : vector<256x64xf32> to vector<256x64xbf16>
    %c0_1 = arith.constant 0 : index
    %c0_2 = arith.constant 0 : index
    %2 = vector.load %arg2[%c0_1, %c0_2] : memref<64x256xbf16, #tpu.memory_space<vmem>>, vector<64x256xbf16>
    %cst = arith.constant dense<0.000000e+00> : vector<256x256xf32>
    %3 = tpu.matmul %1, %2, %cst {dimension_numbers = #tpu.dot_dimension_numbers<[1], [0], [0], [1], [0, 0, 1, 1], [], []>} : vector<256x64xbf16>, vector<64x256xbf16>, vector<256x256xf32> -> vector<256x256xf32>
    %c0_3 = arith.constant 0 : index
    %c0_4 = arith.constant 0 : index
    %4 = vector.load %arg3[%c0_3, %c0_4] : memref<1x256xf32, #tpu.memory_space<vmem>>, vector<1x256xf32>
    %5 = vector.broadcast %4 : vector<1x256xf32> to vector<256x256xf32>
    %6 = arith.addf %3, %5 : vector<256x256xf32>
    %cst_5 = arith.constant 2.000000e-01 : f32
    %7 = vector.broadcast %cst_5 : f32 to vector<256x256xf32>
    %8 = arith.mulf %7, %6 : vector<256x256xf32>
    %9 = arith.maximumf %6, %8 : vector<256x256xf32>
    %10 = arith.truncf %9 : vector<256x256xf32> to vector<256x256xbf16>
    %c0_6 = arith.constant 0 : index
    %c0_7 = arith.constant 0 : index
    %11 = vector.load %arg4[%c0_6, %c0_7] : memref<256x128xbf16, #tpu.memory_space<vmem>>, vector<256x128xbf16>
    %cst_8 = arith.constant dense<0.000000e+00> : vector<256x128xf32>
    %12 = tpu.matmul %10, %11, %cst_8 {dimension_numbers = #tpu.dot_dimension_numbers<[1], [0], [0], [1], [0, 0, 1, 1], [], []>} : vector<256x256xbf16>, vector<256x128xbf16>, vector<256x128xf32> -> vector<256x128xf32>
    %c0_9 = arith.constant 0 : index
    %c0_10 = arith.constant 0 : index
    %13 = vector.load %arg5[%c0_9, %c0_10] : memref<1x128xf32, #tpu.memory_space<vmem>>, vector<1x128xf32>
    %14 = vector.broadcast %13 : vector<1x128xf32> to vector<256x128xf32>
    %15 = arith.addf %12, %14 : vector<256x128xf32>
    %cst_11 = arith.constant 2.000000e-01 : f32
    %16 = vector.broadcast %cst_11 : f32 to vector<256x128xf32>
    %17 = arith.mulf %16, %15 : vector<256x128xf32>
    %18 = arith.maximumf %15, %17 : vector<256x128xf32>
    %c0_12 = arith.constant 0 : index
    %c0_13 = arith.constant 0 : index
    %19 = vector.load %arg6[%c0_12, %c0_13] : memref<1x128xf32, #tpu.memory_space<vmem>>, vector<1x128xf32>
    %20 = vector.broadcast %19 : vector<1x128xf32> to vector<256x128xf32>
    %21 = arith.mulf %18, %20 : vector<256x128xf32>
    %cst_14 = arith.constant dense<0.000000e+00> : vector<256xf32>
    %22 = vector.multi_reduction <add>, %21, %cst_14 [1] : vector<256x128xf32> to vector<256xf32>
    %23 = vector.shape_cast %22 : vector<256xf32> to vector<256x1xf32>
    %c0_15 = arith.constant 0 : index
    %c0_16 = arith.constant 0 : index
    %24 = vector.load %arg7[%c0_15, %c0_16] : memref<1x1xf32, #tpu.memory_space<vmem>>, vector<1x1xf32>
    %25 = vector.broadcast %24 : vector<1x1xf32> to vector<256x1xf32>
    %26 = arith.addf %23, %25 : vector<256x1xf32>
    %cst_17 = arith.constant 5.000000e-01 : f32
    %27 = vector.broadcast %cst_17 : f32 to vector<256x1xf32>
    %28 = arith.mulf %27, %26 : vector<256x1xf32>
    %29 = math.tanh %28 : vector<256x1xf32>
    %cst_18 = arith.constant 1.000000e+00 : f32
    %30 = vector.broadcast %cst_18 : f32 to vector<256x1xf32>
    %31 = arith.addf %29, %30 : vector<256x1xf32>
    %cst_19 = arith.constant 5.000000e-01 : f32
    %32 = vector.broadcast %cst_19 : f32 to vector<256x1xf32>
    %33 = arith.mulf %32, %31 : vector<256x1xf32>
    %c0_20 = arith.constant 0 : index
    %c0_21 = arith.constant 0 : index
    %34 = vector.load %arg8[%c0_20, %c0_21] : memref<256x1xf32, #tpu.memory_space<vmem>>, vector<256x1xf32>
    tpu.vector_store %arg8[%c0_20, %c0_21], %33 {strides = array<i32>} : memref<256x1xf32, #tpu.memory_space<vmem>>, vector<256x1xf32>,
    return
  }
  func.func @transform_0(%arg0: i32) -> (i32, i32) {
    %c0_i32 = arith.constant 0 : i32
    %c0_i32_0 = arith.constant 0 : i32
    return %arg0, %c0_i32 : i32, i32
  }
  func.func @transform_1(%arg0: i32) -> (i32, i32) {
    %c0_i32 = arith.constant 0 : i32
    %c0_i32_0 = arith.constant 0 : i32
    %c0_i32_1 = arith.constant 0 : i32
    return %c0_i32, %c0_i32_0 : i32, i32
  }
  func.func @transform_2(%arg0: i32) -> (i32, i32) {
    %c0_i32 = arith.constant 0 : i32
    %c0_i32_0 = arith.constant 0 : i32
    %c0_i32_1 = arith.constant 0 : i32
    return %c0_i32, %c0_i32_0 : i32, i32
  }
  func.func @transform_3(%arg0: i32) -> (i32, i32) {
    %c0_i32 = arith.constant 0 : i32
    %c0_i32_0 = arith.constant 0 : i32
    %c0_i32_1 = arith.constant 0 : i32
    return %c0_i32, %c0_i32_0 : i32, i32
  }
  func.func @transform_4(%arg0: i32) -> (i32, i32) {
    %c0_i32 = arith.constant 0 : i32
    %c0_i32_0 = arith.constant 0 : i32
    %c0_i32_1 = arith.constant 0 : i32
    return %c0_i32, %c0_i32_0 : i32, i32
  }
  func.func @transform_5(%arg0: i32) -> (i32, i32) {
    %c0_i32 = arith.constant 0 : i32
    %c0_i32_0 = arith.constant 0 : i32
    %c0_i32_1 = arith.constant 0 : i32
    return %c0_i32, %c0_i32_0 : i32, i32
  }
  func.func @transform_6(%arg0: i32) -> (i32, i32) {
    %c0_i32 = arith.constant 0 : i32
    %c0_i32_0 = arith.constant 0 : i32
    %c0_i32_1 = arith.constant 0 : i32
    return %c0_i32, %c0_i32_0 : i32, i32
  }
  func.func @transform_7(%arg0: i32) -> (i32, i32) {
    %c0_i32 = arith.constant 0 : i32
    %c0_i32_0 = arith.constant 0 : i32
    return %arg0, %c0_i32 : i32, i32
  }
}

</mosaic_0001>

<llo_original>
// kernel: discriminator_forward.1
$region0: #{discriminator_forward.1}
  #allocation0 [shape = 'u32[]', space=smem, size = 0x4, offset = 0x4, fixed_abs, tag = 'smem constant byte address 0x4 - core index']
  #allocation1 [shape = 'u32[144,128]{1,0:T(1,128)}', space=vmem, size = 0x12000, scoped, tag = 'internal scratch']
  #allocation2 [shape = 'f32[1,1]{1,0:T(1,128)S(1)}', space=vmem, size = 0x200, scoped, tag = 'scoped memory for discriminator_forward.1']
  %s0 = inlined_call_operand.vmem [shape: f32[8,64], index: 0, kind: input, shape index: {}]
  %s1 = inlined_call_operand.vmem [shape: bf16[64,256], index: 1, kind: input, shape index: {}]
  %s2 = inlined_call_operand.vmem [shape: f32[1,256], index: 2, kind: input, shape index: {}]
  %s3 = inlined_call_operand.vmem [shape: bf16[256,128], index: 3, kind: input, shape index: {}]
  %s4 = inlined_call_operand.vmem [shape: f32[1,128], index: 4, kind: input, shape index: {}]
  %s5 = inlined_call_operand.vmem [shape: f32[1,128], index: 5, kind: input, shape index: {}]
  %s6 = inlined_call_operand.<no memory space> [shape: f32[1,1], index: 6, kind: input, shape index: {}]
  %s7 = inlined_call_operand.vmem [shape: f32[8,1], index: 7, kind: output, shape index: {}]
  %s8 = sld [smem:[#allocation0]]
  $region72: #{discriminator_forward.1} parent=0
    _
  %s10 = ssub.s32 1, %s8
  %s11 = scalar_select 0, %s10, %s8
  %v12 = vstv %s6
  %13 = vst [vmem:[#allocation2] sm:$0x1] %v12
  $region1: #{discriminator_forward.1} parent=0
    #allocation3 [shape = 'u8[131072]{0}', space=vmem, size = 0x20000, scoped, tag = 'output window, operand 0, single buffered']
    // Predicated region
    $region2: #{discriminator_forward.1} parent=1 // pred_check
      _
    $region3: #{discriminator_forward.1} parent=1 // pred_check_branch
      %15 = sbr.rel (0) target = $region5
    $region4: #{discriminator_forward.1} parent=1 // pred_region
      _
    $region5: #{discriminator_forward.1} parent=1 // pred_fallthru
      _
    // Predicated region
    $region6: #{discriminator_forward.1} parent=1 // pred_check
      _
    $region7: #{discriminator_forward.1} parent=1 // pred_check_branch
      %17 = sbr.rel (0) target = $region9
    $region8: #{discriminator_forward.1} parent=1 // pred_region
      _
    $region9: #{discriminator_forward.1} parent=1 // pred_fallthru
      _
    // Predicated region
    $region10: #{discriminator_forward.1} parent=1 // pred_check
      _
    $region11: #{discriminator_forward.1} parent=1 // pred_check_branch
      %19 = sbr.rel (0) target = $region13
    $region12: #{discriminator_forward.1} parent=1 // pred_region
      _
    $region13: #{discriminator_forward.1} parent=1 // pred_fallthru
      _
    // Predicated region
    $region14: #{discriminator_forward.1} parent=1 // pred_check
      _
    $region15: #{discriminator_forward.1} parent=1 // pred_check_branch
      %21 = sbr.rel (0) target = $region17
    $region16: #{discriminator_forward.1} parent=1 // pred_region
      _
    $region17: #{discriminator_forward.1} parent=1 // pred_fallthru
      _
    // Predicated region
    $region18: #{discriminator_forward.1} parent=1 // pred_check
      _
    $region19: #{discriminator_forward.1} parent=1 // pred_check_branch
      %23 = sbr.rel (0) target = $region21
    $region20: #{discriminator_forward.1} parent=1 // pred_region
      _
    $region21: #{discriminator_forward.1} parent=1 // pred_fallthru
      _
    // Predicated region
    $region22: #{discriminator_forward.1} parent=1 // pred_check
      _
    $region23: #{discriminator_forward.1} parent=1 // pred_check_branch
      %25 = sbr.rel (0) target = $region25
    $region24: #{discriminator_forward.1} parent=1 // pred_region
      _
    $region25: #{discriminator_forward.1} parent=1 // pred_fallthru
      _
    // Predicated region
    $region26: #{discriminator_forward.1} parent=1 // pred_check
      _
    $region27: #{discriminator_forward.1} parent=1 // pred_check_branch
      %27 = sbr.rel (0) target = $region29
    $region28: #{discriminator_forward.1} parent=1 // pred_region
      _
    $region29: #{discriminator_forward.1} parent=1 // pred_fallthru
      _
    %v29 = vld [vmem:[%s0] sm:$0xff]
    %v30 = vld [vmem:[%s0 + $0x8] sm:$0xff]
    %v31 = vld [vmem:[%s0 + $0x10] sm:$0xff]
    %v32 = vld [vmem:[%s0 + $0x18] sm:$0xff]
    %v33 = vld [vmem:[%s0 + $0x20] sm:$0xff]
    %v34 = vld [vmem:[%s0 + $0x28] sm:$0xff]
    %v35 = vld [vmem:[%s0 + $0x30] sm:$0xff]
    %v36 = vld [vmem:[%s0 + $0x38] sm:$0xff]
    %v37 = vld [vmem:[%s0 + $0x40] sm:$0xff]
    %v38 = vld [vmem:[%s0 + $0x48] sm:$0xff]
    %v39 = vld [vmem:[%s0 + $0x50] sm:$0xff]
    %v40 = vld [vmem:[%s0 + $0x58] sm:$0xff]
    %v41 = vld [vmem:[%s0 + $0x60] sm:$0xff]
    %v42 = vld [vmem:[%s0 + $0x68] sm:$0xff]
    %v43 = vld [vmem:[%s0 + $0x70] sm:$0xff]
    %v44 = vld [vmem:[%s0 + $0x78] sm:$0xff]
    %v45 = vld [vmem:[%s0 + $0x80] sm:$0xff]
    %v46 = vld [vmem:[%s0 + $0x88] sm:$0xff]
    %v47 = vld [vmem:[%s0 + $0x90] sm:$0xff]
    %v48 = vld [vmem:[%s0 + $0x98] sm:$0xff]
    %v49 = vld [vmem:[%s0 + $0xa0] sm:$0xff]
    %v50 = vld [vmem:[%s0 + $0xa8] sm:$0xff]
    %v51 = vld [vmem:[%s0 + $0xb0] sm:$0xff]
    %v52 = vld [vmem:[%s0 + $0xb8] sm:$0xff]
    %v53 = vld [vmem:[%s0 + $0xc0] sm:$0xff]
    %v54 = vld [vmem:[%s0 + $0xc8] sm:$0xff]
    %v55 = vld [vmem:[%s0 + $0xd0] sm:$0xff]
    %v56 = vld [vmem:[%s0 + $0xd8] sm:$0xff]
    %v57 = vld [vmem:[%s0 + $0xe0] sm:$0xff]
    %v58 = vld [vmem:[%s0 + $0xe8] sm:$0xff]
    %v59 = vld [vmem:[%s0 + $0xf0] sm:$0xff]
    %v60 = vld [vmem:[%s0 + $0xf8] sm:$0xff]
    %v61 = vpack.c.bf16 %v30, %v29
    %v62 = vpack.c.bf16 %v32, %v31
    %v63 = vpack.c.bf16 %v34, %v33
    %v64 = vpack.c.bf16 %v36, %v35
    %v65 = vpack.c.bf16 %v38, %v37
    %v66 = vpack.c.bf16 %v40, %v39
    %v67 = vpack.c.bf16 %v42, %v41
    %v68 = vpack.c.bf16 %v44, %v43
    %v69 = vpack.c.bf16 %v46, %v45
    %v70 = vpack.c.bf16 %v48, %v47
    %v71 = vpack.c.bf16 %v50, %v49
    %v72 = vpack.c.bf16 %v52, %v51
    %v73 = vpack.c.bf16 %v54, %v53
    %v74 = vpack.c.bf16 %v56, %v55
    %v75 = vpack.c.bf16 %v58, %v57
    %v76 = vpack.c.bf16 %v60, %v59
    %v77 = vld [vmem:[%s1] sm:$0xff]
    %v78 = vld [vmem:[%s1 + $0x8] sm:$0xff]
    %v79 = vld [vmem:[%s1 + $0x10] sm:$0xff]
    %v80 = vld [vmem:[%s1 + $0x18] sm:$0xff]
    %v81 = vld [vmem:[%s1 + $0x20] sm:$0xff]
    %v82 = vld [vmem:[%s1 + $0x28] sm:$0xff]
    %v83 = vld [vmem:[%s1 + $0x30] sm:$0xff]
    %v84 = vld [vmem:[%s1 + $0x38] sm:$0xff]
    %v85 = vld [vmem:[%s2] sm:$0x3]
    %v87 = vlaneseq
    %v88 = vshrl.u32 %v87, 7
    %v89 = vsub.s32 0, %v88
    %v90 = vrot.slane %v85, %v89
    %v91 = vlaneseq
    %v92 = vshrl.u32 %v91, 7
    %v93 = vsub.s32 1, %v92
    %v94 = vrot.slane %v85, %v93
    %v105 = vunpack.c.l.b16 %v77
    %v106 = vunpack.c.h.b16 %v77
    %v107 = vunpack.c.l.b16 %v78
    %v108 = vunpack.c.h.b16 %v78
    %v109 = vunpack.c.l.b16 %v79
    %v110 = vunpack.c.h.b16 %v79
    %v111 = vunpack.c.l.b16 %v80
    %v112 = vunpack.c.h.b16 %v80
    %v113 = vunpack.c.l.b16 %v81
    %v114 = vunpack.c.h.b16 %v81
    %v115 = vunpack.c.l.b16 %v82
    %v116 = vunpack.c.h.b16 %v82
    %v117 = vunpack.c.l.b16 %v83
    %v118 = vunpack.c.h.b16 %v83
    %v119 = vunpack.c.l.b16 %v84
    %v120 = vunpack.c.h.b16 %v84
    %v121 = vpack.c.b16 %v107, %v105
    %v122 = vpack.c.b16 %v108, %v106
    %v123 = vpack.c.b16 %v111, %v109
    %v124 = vpack.c.b16 %v112, %v110
    %v125 = vpack.c.b16 %v115, %v113
    %v126 = vpack.c.b16 %v116, %v114
    %v127 = vpack.c.b16 %v119, %v117
    %v128 = vpack.c.b16 %v120, %v118
    %vm137 = vcmask 523264
    %v139 = vsel %vm137, %v61, 0
    %v142 = vsel %vm137, %v62, 0
    %v145 = vsel %vm137, %v63, 0
    %v148 = vsel %vm137, %v64, 0
    %v151 = vsel %vm137, %v65, 0
    %v154 = vsel %vm137, %v66, 0
    %v157 = vsel %vm137, %v67, 0
    %v160 = vsel %vm137, %v68, 0
    %v163 = vsel %vm137, %v69, 0
    %v166 = vsel %vm137, %v70, 0
    %v169 = vsel %vm137, %v71, 0
    %v172 = vsel %vm137, %v72, 0
    %v175 = vsel %vm137, %v73, 0
    %v178 = vsel %vm137, %v74, 0
    %v181 = vsel %vm137, %v75, 0
    %v184 = vsel %vm137, %v76, 0
    %186 = vmatprep.subr.bf16.mxu0 0
    %187 = vmatpush1.bf16.msra.mxu0 0
    %188 = vmatprep.subr.bf16.mxu0 0
    %189 = vmatpush1.bf16.msra.mxu0 0
    %190 = vmatprep.subr.bf16.mxu0 0
    %191 = vmatpush1.bf16.msra.mxu0 0
    %192 = vmatprep.subr.bf16.mxu0 0
    %193 = vmatpush1.bf16.msra.mxu0 0
    %194 = vmatprep.subr.bf16.mxu0 %v128
    %195 = vmatpush1.bf16.msra.mxu0 %v127
    %196 = vmatprep.subr.bf16.mxu0 %v126
    %197 = vmatpush1.bf16.msra.mxu0 %v125
    %198 = vmatprep.subr.bf16.mxu0 %v124
    %199 = vmatpush1.bf16.msra.mxu0 %v123
    %200 = vmatprep.subr.bf16.mxu0 %v122
    %201 = vmatpush1.bf16.msra.mxu0 %v121
    %202 = vmatprep.subr.bf16.mxu0 0
    %203 = vmatpush2.bf16.msra.mxu0 0
    %204 = vmatprep.subr.bf16.mxu0 0
    %205 = vmatpush2.bf16.msra.mxu0 0
    %206 = vmatprep.subr.bf16.mxu0 0
    %207 = vmatpush2.bf16.msra.mxu0 0
    %208 = vmatprep.subr.bf16.mxu0 0
    %209 = vmatpush2.bf16.msra.mxu0 0
    %210 = vmatprep.subr.bf16.mxu0 0
    %211 = vmatpush2.bf16.msra.mxu0 0
    %212 = vmatprep.subr.bf16.mxu0 0
    %213 = vmatpush2.bf16.msra.mxu0 0
    %214 = vmatprep.subr.bf16.mxu0 0
    %215 = vmatpush2.bf16.msra.mxu0 0
    %216 = vmatprep.subr.bf16.mxu0 0
    %217 = vmatpush2.bf16.msra.mxu0 0
    %218 = vmatprep.mubr.bf16.mxu0 0
    %219 = vmatmul.mubr.bf16.gmra.mxu0 %v139
    %v220 = vpop.f32.mrf.mxu0
    %v221 = vadd.f32 %v90, %v220
    %v222 = vpop.f32.mrf.mxu0
    %v223 = vadd.f32 %v94, %v222
    %v224 = vpop.f32.mrf.mxu0
    %v225 = vadd.f32 %v90, %v224
    %v226 = vpop.f32.mrf.mxu0
    %v227 = vadd.f32 %v94, %v226
    %228 = vmatprep.mubr.bf16.mxu0 0
    %229 = vmatmul.mubr.bf16.gmra.mxu0 %v142
    %v230 = vpop.f32.mrf.mxu0
    %v231 = vadd.f32 %v90, %v230
    %v232 = vpop.f32.mrf.mxu0
    %v233 = vadd.f32 %v94, %v232
    %v234 = vpop.f32.mrf.mxu0
    %v235 = vadd.f32 %v90, %v234
    %v236 = vpop.f32.mrf.mxu0
    %v237 = vadd.f32 %v94, %v236
    %238 = vmatprep.mubr.bf16.mxu0 0
    %239 = vmatmul.mubr.bf16.gmra.mxu0 %v145
    %v240 = vpop.f32.mrf.mxu0
    %v241 = vadd.f32 %v90, %v240
    %v242 = vpop.f32.mrf.mxu0
    %v243 = vadd.f32 %v94, %v242
    %v244 = vpop.f32.mrf.mxu0
    %v245 = vadd.f32 %v90, %v244
    %v246 = vpop.f32.mrf.mxu0
    %v247 = vadd.f32 %v94, %v246
    %248 = vmatprep.mubr.bf16.mxu0 0
    %249 = vmatmul.mubr.bf16.gmra.mxu0 %v148
    %v250 = vpop.f32.mrf.mxu0
    %v251 = vadd.f32 %v90, %v250
    %v252 = vpop.f32.mrf.mxu0
    %v253 = vadd.f32 %v94, %v252
    %v254 = vpop.f32.mrf.mxu0
    %v255 = vadd.f32 %v90, %v254
    %v256 = vpop.f32.mrf.mxu0
    %v257 = vadd.f32 %v94, %v256
    %258 = vmatprep.mubr.bf16.mxu0 0
    %259 = vmatmul.mubr.bf16.gmra.mxu0 %v151
    %v260 = vpop.f32.mrf.mxu0
    %v261 = vadd.f32 %v90, %v260
    %v262 = vpop.f32.mrf.mxu0
    %v263 = vadd.f32 %v94, %v262
    %v264 = vpop.f32.mrf.mxu0
    %v265 = vadd.f32 %v90, %v264
    %v266 = vpop.f32.mrf.mxu0
    %v267 = vadd.f32 %v94, %v266
    %268 = vmatprep.mubr.bf16.mxu0 0
    %269 = vmatmul.mubr.bf16.gmra.mxu0 %v154
    %v270 = vpop.f32.mrf.mxu0
    %v271 = vadd.f32 %v90, %v270
    %v272 = vpop.f32.mrf.mxu0
    %v273 = vadd.f32 %v94, %v272
    %v274 = vpop.f32.mrf.mxu0
    %v275 = vadd.f32 %v90, %v274
    %v276 = vpop.f32.mrf.mxu0
    %v277 = vadd.f32 %v94, %v276
    %278 = vmatprep.mubr.bf16.mxu0 0
    %279 = vmatmul.mubr.bf16.gmra.mxu0 %v157
    %v280 = vpop.f32.mrf.mxu0
    %v281 = vadd.f32 %v90, %v280
    %v282 = vpop.f32.mrf.mxu0
    %v283 = vadd.f32 %v94, %v282
    %v284 = vpop.f32.mrf.mxu0
    %v285 = vadd.f32 %v90, %v284
    %v286 = vpop.f32.mrf.mxu0
    %v287 = vadd.f32 %v94, %v286
    %288 = vmatprep.mubr.bf16.mxu0 0
    %289 = vmatmul.mubr.bf16.gmra.mxu0 %v160
    %v290 = vpop.f32.mrf.mxu0
    %v291 = vadd.f32 %v90, %v290
    %v292 = vpop.f32.mrf.mxu0
    %v293 = vadd.f32 %v94, %v292
    %v294 = vpop.f32.mrf.mxu0
    %v295 = vadd.f32 %v90, %v294
    %v296 = vpop.f32.mrf.mxu0
    %v297 = vadd.f32 %v94, %v296
    %298 = vmatprep.mubr.bf16.mxu0 0
    %299 = vmatmul.mubr.bf16.gmra.mxu0 %v163
    %v300 = vpop.f32.mrf.mxu0
    %v301 = vadd.f32 %v90, %v300
    %v302 = vpop.f32.mrf.mxu0
    %v303 = vadd.f32 %v94, %v302
    %v304 = vpop.f32.mrf.mxu0
    %v305 = vadd.f32 %v90, %v304
    %v306 = vpop.f32.mrf.mxu0
    %v307 = vadd.f32 %v94, %v306
    %308 = vmatprep.mubr.bf16.mxu0 0
    %309 = vmatmul.mubr.bf16.gmra.mxu0 %v166
    %v310 = vpop.f32.mrf.mxu0
    %v311 = vadd.f32 %v90, %v310
    %v312 = vpop.f32.mrf.mxu0
    %v313 = vadd.f32 %v94, %v312
    %v314 = vpop.f32.mrf.mxu0
    %v315 = vadd.f32 %v90, %v314
    %v316 = vpop.f32.mrf.mxu0
    %v317 = vadd.f32 %v94, %v316
    %318 = vmatprep.mubr.bf16.mxu0 0
    %319 = vmatmul.mubr.bf16.gmra.mxu0 %v169
    %v320 = vpop.f32.mrf.mxu0
    %v321 = vadd.f32 %v90, %v320
    %v322 = vpop.f32.mrf.mxu0
    %v323 = vadd.f32 %v94, %v322
    %v324 = vpop.f32.mrf.mxu0
    %v325 = vadd.f32 %v90, %v324
    %v326 = vpop.f32.mrf.mxu0
    %v327 = vadd.f32 %v94, %v326
    %328 = vmatprep.mubr.bf16.mxu0 0
    %329 = vmatmul.mubr.bf16.gmra.mxu0 %v172
    %v330 = vpop.f32.mrf.mxu0
    %v331 = vadd.f32 %v90, %v330
    %v332 = vpop.f32.mrf.mxu0
    %v333 = vadd.f32 %v94, %v332
    %v334 = vpop.f32.mrf.mxu0
    %v335 = vadd.f32 %v90, %v334
    %v336 = vpop.f32.mrf.mxu0
    %v337 = vadd.f32 %v94, %v336
    %338 = vmatprep.mubr.bf16.mxu0 0
    %339 = vmatmul.mubr.bf16.gmra.mxu0 %v175
    %v340 = vpop.f32.mrf.mxu0
    %v341 = vadd.f32 %v90, %v340
    %v342 = vpop.f32.mrf.mxu0
    %v343 = vadd.f32 %v94, %v342
    %v344 = vpop.f32.mrf.mxu0
    %v345 = vadd.f32 %v90, %v344
    %v346 = vpop.f32.mrf.mxu0
    %v347 = vadd.f32 %v94, %v346
    %348 = vmatprep.mubr.bf16.mxu0 0
    %349 = vmatmul.mubr.bf16.gmra.mxu0 %v178
    %v350 = vpop.f32.mrf.mxu0
    %v351 = vadd.f32 %v90, %v350
    %v352 = vpop.f32.mrf.mxu0
    %v353 = vadd.f32 %v94, %v352
    %v354 = vpop.f32.mrf.mxu0
    %v355 = vadd.f32 %v90, %v354
    %v356 = vpop.f32.mrf.mxu0
    %v357 = vadd.f32 %v94, %v356
    %358 = vmatprep.mubr.bf16.mxu0 0
    %359 = vmatmul.mubr.bf16.gmra.mxu0 %v181
    %v360 = vpop.f32.mrf.mxu0
    %v361 = vadd.f32 %v90, %v360
    %v362 = vpop.f32.mrf.mxu0
    %v363 = vadd.f32 %v94, %v362
    %v364 = vpop.f32.mrf.mxu0
    %v365 = vadd.f32 %v90, %v364
    %v366 = vpop.f32.mrf.mxu0
    %v367 = vadd.f32 %v94, %v366
    %368 = vmatprep.mubr.bf16.mxu0 0
    %369 = vmatmul.mubr.bf16.gmra.mxu0 %v184
    %v370 = vpop.f32.mrf.mxu0
    %v371 = vadd.f32 %v90, %v370
    %v372 = vpop.f32.mrf.mxu0
    %v373 = vadd.f32 %v94, %v372
    %v374 = vpop.f32.mrf.mxu0
    %v375 = vadd.f32 %v90, %v374
    %v376 = vpop.f32.mrf.mxu0
    %v377 = vadd.f32 %v94, %v376
    %378 = vdwg.mxu0
    %v379 = vmul.f32 %v221, 0.2
    %v380 = vmul.f32 %v223, 0.2
    %v381 = vmul.f32 %v225, 0.2
    %v382 = vmul.f32 %v227, 0.2
    %v383 = vmul.f32 %v231, 0.2
    %v384 = vmul.f32 %v233, 0.2
    %v385 = vmul.f32 %v235, 0.2
    %v386 = vmul.f32 %v237, 0.2
    %v387 = vmul.f32 %v241, 0.2
    %v388 = vmul.f32 %v243, 0.2
    %v389 = vmul.f32 %v245, 0.2
    %v390 = vmul.f32 %v247, 0.2
    %v391 = vmul.f32 %v251, 0.2
    %v392 = vmul.f32 %v253, 0.2
    %v393 = vmul.f32 %v255, 0.2
    %v394 = vmul.f32 %v257, 0.2
    %v395 = vmul.f32 %v261, 0.2
    %v396 = vmul.f32 %v263, 0.2
    %v397 = vmul.f32 %v265, 0.2
    %v398 = vmul.f32 %v267, 0.2
    %v399 = vmul.f32 %v271, 0.2
    %v400 = vmul.f32 %v273, 0.2
    %v401 = vmul.f32 %v275, 0.2
    %v402 = vmul.f32 %v277, 0.2
    %v403 = vmul.f32 %v281, 0.2
    %v404 = vmul.f32 %v283, 0.2
    %v405 = vmul.f32 %v285, 0.2
    %v406 = vmul.f32 %v287, 0.2
    %v407 = vmul.f32 %v291, 0.2
    %v408 = vmul.f32 %v293, 0.2
    %v409 = vmul.f32 %v295, 0.2
    %v410 = vmul.f32 %v297, 0.2
    %v411 = vmul.f32 %v301, 0.2
    %v412 = vmul.f32 %v303, 0.2
    %v413 = vmul.f32 %v305, 0.2
    %v414 = vmul.f32 %v307, 0.2
    %v415 = vmul.f32 %v311, 0.2
    %v416 = vmul.f32 %v313, 0.2
    %v417 = vmul.f32 %v315, 0.2
    %v418 = vmul.f32 %v317, 0.2
    %v419 = vmul.f32 %v321, 0.2
    %v420 = vmul.f32 %v323, 0.2
    %v421 = vmul.f32 %v325, 0.2
    %v422 = vmul.f32 %v327, 0.2
    %v423 = vmul.f32 %v331, 0.2
    %v424 = vmul.f32 %v333, 0.2
    %v425 = vmul.f32 %v335, 0.2
    %v426 = vmul.f32 %v337, 0.2
    %v427 = vmul.f32 %v341, 0.2
    %v428 = vmul.f32 %v343, 0.2
    %v429 = vmul.f32 %v345, 0.2
    %v430 = vmul.f32 %v347, 0.2
    %v431 = vmul.f32 %v351, 0.2
    %v432 = vmul.f32 %v353, 0.2
    %v433 = vmul.f32 %v355, 0.2
    %v434 = vmul.f32 %v357, 0.2
    %v435 = vmul.f32 %v361, 0.2
    %v436 = vmul.f32 %v363, 0.2
    %v437 = vmul.f32 %v365, 0.2
    %v438 = vmul.f32 %v367, 0.2
    %v439 = vmul.f32 %v371, 0.2
    %v440 = vmul.f32 %v373, 0.2
    %v441 = vmul.f32 %v375, 0.2
    %v442 = vmul.f32 %v377, 0.2
    %v443 = vmax.f32 %v221, %v379
    %v444 = vmax.f32 %v223, %v380
    %v445 = vmax.f32 %v225, %v381
    %v446 = vmax.f32 %v227, %v382
    %v447 = vmax.f32 %v231, %v383
    %v448 = vmax.f32 %v233, %v384
    %v449 = vmax.f32 %v235, %v385
    %v450 = vmax.f32 %v237, %v386
    %v451 = vmax.f32 %v241, %v387
    %v452 = vmax.f32 %v243, %v388
    %v453 = vmax.f32 %v245, %v389
    %v454 = vmax.f32 %v247, %v390
    %v455 = vmax.f32 %v251, %v391
    %v456 = vmax.f32 %v253, %v392
    %v457 = vmax.f32 %v255, %v393
    %v458 = vmax.f32 %v257, %v394
    %v459 = vmax.f32 %v261, %v395
    %v460 = vmax.f32 %v263, %v396
    %v461 = vmax.f32 %v265, %v397
    %v462 = vmax.f32 %v267, %v398
    %v463 = vmax.f32 %v271, %v399
    %v464 = vmax.f32 %v273, %v400
    %v465 = vmax.f32 %v275, %v401
    %v466 = vmax.f32 %v277, %v402
    %v467 = vmax.f32 %v281, %v403
    %v468 = vmax.f32 %v283, %v404
    %v469 = vmax.f32 %v285, %v405
    %v470 = vmax.f32 %v287, %v406
    %v471 = vmax.f32 %v291, %v407
    %v472 = vmax.f32 %v293, %v408
    %v473 = vmax.f32 %v295, %v409
    %v474 = vmax.f32 %v297, %v410
    %v475 = vmax.f32 %v301, %v411
    %v476 = vmax.f32 %v303, %v412
    %v477 = vmax.f32 %v305, %v413
    %v478 = vmax.f32 %v307, %v414
    %v479 = vmax.f32 %v311, %v415
    %v480 = vmax.f32 %v313, %v416
    %v481 = vmax.f32 %v315, %v417
    %v482 = vmax.f32 %v317, %v418
    %v483 = vmax.f32 %v321, %v419
    %v484 = vmax.f32 %v323, %v420
    %v485 = vmax.f32 %v325, %v421
    %v486 = vmax.f32 %v327, %v422
    %v487 = vmax.f32 %v331, %v423
    %v488 = vmax.f32 %v333, %v424
    %v489 = vmax.f32 %v335, %v425
    %v490 = vmax.f32 %v337, %v426
    %v491 = vmax.f32 %v341, %v427
    %v492 = vmax.f32 %v343, %v428
    %v493 = vmax.f32 %v345, %v429
    %v494 = vmax.f32 %v347, %v430
    %v495 = vmax.f32 %v351, %v431
    %v496 = vmax.f32 %v353, %v432
    %v497 = vmax.f32 %v355, %v433
    %v498 = vmax.f32 %v357, %v434
    %v499 = vmax.f32 %v361, %v435
    %v500 = vmax.f32 %v363, %v436
    %v501 = vmax.f32 %v365, %v437
    %v502 = vmax.f32 %v367, %v438
    %v503 = vmax.f32 %v371, %v439
    %v504 = vmax.f32 %v373, %v440
    %v505 = vmax.f32 %v375, %v441
    %v506 = vmax.f32 %v377, %v442
    %v507 = vpack.c.bf16 %v445, %v443
    %v508 = vpack.c.bf16 %v446, %v444
    %v509 = vpack.c.bf16 %v449, %v447
    %v510 = vpack.c.bf16 %v450, %v448
    %v511 = vpack.c.bf16 %v453, %v451
    %v512 = vpack.c.bf16 %v454, %v452
    %v513 = vpack.c.bf16 %v457, %v455
    %v514 = vpack.c.bf16 %v458, %v456
    %v515 = vpack.c.bf16 %v461, %v459
    %v516 = vpack.c.bf16 %v462, %v460
    %v517 = vpack.c.bf16 %v465, %v463
    %v518 = vpack.c.bf16 %v466, %v464
    %v519 = vpack.c.bf16 %v469, %v467
    %v520 = vpack.c.bf16 %v470, %v468
    %v521 = vpack.c.bf16 %v473, %v471
    %v522 = vpack.c.bf16 %v474, %v472
    %v523 = vpack.c.bf16 %v477, %v475
    %v524 = vpack.c.bf16 %v478, %v476
    %v525 = vpack.c.bf16 %v481, %v479
    %v526 = vpack.c.bf16 %v482, %v480
    %v527 = vpack.c.bf16 %v485, %v483
    %v528 = vpack.c.bf16 %v486, %v484
    %v529 = vpack.c.bf16 %v489, %v487
    %v530 = vpack.c.bf16 %v490, %v488
    %v531 = vpack.c.bf16 %v493, %v491
    %v532 = vpack.c.bf16 %v494, %v492
    %v533 = vpack.c.bf16 %v497, %v495
    %v534 = vpack.c.bf16 %v498, %v496
    %v535 = vpack.c.bf16 %v501, %v499
    %v536 = vpack.c.bf16 %v502, %v500
    %v537 = vpack.c.bf16 %v505, %v503
    %v538 = vpack.c.bf16 %v506, %v504
    %v539 = vld [vmem:[%s3] sm:$0xf]
    %v540 = vld [vmem:[%s3 + $0x4] sm:$0xf]
    %v541 = vld [vmem:[%s3 + $0x8] sm:$0xf]
    %v542 = vld [vmem:[%s3 + $0xc] sm:$0xf]
    %v543 = vld [vmem:[%s3 + $0x10] sm:$0xf]
    %v544 = vld [vmem:[%s3 + $0x14] sm:$0xf]
    %v545 = vld [vmem:[%s3 + $0x18] sm:$0xf]
    %v546 = vld [vmem:[%s3 + $0x1c] sm:$0xf]
    %v547 = vld [vmem:[%s3 + $0x20] sm:$0xf]
    %v548 = vld [vmem:[%s3 + $0x24] sm:$0xf]
    %v549 = vld [vmem:[%s3 + $0x28] sm:$0xf]
    %v550 = vld [vmem:[%s3 + $0x2c] sm:$0xf]
    %v551 = vld [vmem:[%s3 + $0x30] sm:$0xf]
    %v552 = vld [vmem:[%s3 + $0x34] sm:$0xf]
    %v553 = vld [vmem:[%s3 + $0x38] sm:$0xf]
    %v554 = vld [vmem:[%s3 + $0x3c] sm:$0xf]
    %v555 = vld [vmem:[%s3 + $0x40] sm:$0xf]
    %v556 = vld [vmem:[%s3 + $0x44] sm:$0xf]
    %v557 = vld [vmem:[%s3 + $0x48] sm:$0xf]
    %v558 = vld [vmem:[%s3 + $0x4c] sm:$0xf]
    %v559 = vld [vmem:[%s3 + $0x50] sm:$0xf]
    %v560 = vld [vmem:[%s3 + $0x54] sm:$0xf]
    %v561 = vld [vmem:[%s3 + $0x58] sm:$0xf]
    %v562 = vld [vmem:[%s3 + $0x5c] sm:$0xf]
    %v563 = vld [vmem:[%s3 + $0x60] sm:$0xf]
    %v564 = vld [vmem:[%s3 + $0x64] sm:$0xf]
    %v565 = vld [vmem:[%s3 + $0x68] sm:$0xf]
    %v566 = vld [vmem:[%s3 + $0x6c] sm:$0xf]
    %v567 = vld [vmem:[%s3 + $0x70] sm:$0xf]
    %v568 = vld [vmem:[%s3 + $0x74] sm:$0xf]
    %v569 = vld [vmem:[%s3 + $0x78] sm:$0xf]
    %v570 = vld [vmem:[%s3 + $0x7c] sm:$0xf]
    %v571 = vld [vmem:[%s4] sm:$0x1]
    %v573 = vlaneseq
    %v574 = vshrl.u32 %v573, 7
    %v575 = vsub.s32 0, %v574
    %v576 = vrot.slane %v571, %v575
    %v610 = vunpack.c.l.b16 %v539
    %v611 = vunpack.c.l.b16 %v540
    %v612 = vunpack.c.l.b16 %v541
    %v613 = vunpack.c.l.b16 %v542
    %v614 = vunpack.c.l.b16 %v543
    %v615 = vunpack.c.l.b16 %v544
    %v616 = vunpack.c.l.b16 %v545
    %v617 = vunpack.c.l.b16 %v546
    %v618 = vunpack.c.l.b16 %v547
    %v619 = vunpack.c.l.b16 %v548
    %v620 = vunpack.c.l.b16 %v549
    %v621 = vunpack.c.l.b16 %v550
    %v622 = vunpack.c.l.b16 %v551
    %v623 = vunpack.c.l.b16 %v552
    %v624 = vunpack.c.l.b16 %v553
    %v625 = vunpack.c.l.b16 %v554
    %v626 = vunpack.c.l.b16 %v555
    %v627 = vunpack.c.l.b16 %v556
    %v628 = vunpack.c.l.b16 %v557
    %v629 = vunpack.c.l.b16 %v558
    %v630 = vunpack.c.l.b16 %v559
    %v631 = vunpack.c.l.b16 %v560
    %v632 = vunpack.c.l.b16 %v561
    %v633 = vunpack.c.l.b16 %v562
    %v634 = vunpack.c.l.b16 %v563
    %v635 = vunpack.c.l.b16 %v564
    %v636 = vunpack.c.l.b16 %v565
    %v637 = vunpack.c.l.b16 %v566
    %v638 = vunpack.c.l.b16 %v567
    %v639 = vunpack.c.l.b16 %v568
    %v640 = vunpack.c.l.b16 %v569
    %v641 = vunpack.c.l.b16 %v570
    %v642 = vpack.c.b16 %v611, %v610
    %v643 = vpack.c.b16 %v613, %v612
    %v644 = vpack.c.b16 %v615, %v614
    %v645 = vpack.c.b16 %v617, %v616
    %v646 = vpack.c.b16 %v619, %v618
    %v647 = vpack.c.b16 %v621, %v620
    %v648 = vpack.c.b16 %v623, %v622
    %v649 = vpack.c.b16 %v625, %v624
    %v650 = vpack.c.b16 %v627, %v626
    %v651 = vpack.c.b16 %v629, %v628
    %v652 = vpack.c.b16 %v631, %v630
    %v653 = vpack.c.b16 %v633, %v632
    %v654 = vpack.c.b16 %v635, %v634
    %v655 = vpack.c.b16 %v637, %v636
    %v656 = vpack.c.b16 %v639, %v638
    %v657 = vpack.c.b16 %v641, %v640
    %674 = vmatprep.subr.bf16.mxu0 0
    %675 = vmatpush1.bf16.msra.mxu0 %v649
    %676 = vmatprep.subr.bf16.mxu0 0
    %677 = vmatpush1.bf16.msra.mxu0 %v648
    %678 = vmatprep.subr.bf16.mxu0 0
    %679 = vmatpush1.bf16.msra.mxu0 %v647
    %680 = vmatprep.subr.bf16.mxu0 0
    %681 = vmatpush1.bf16.msra.mxu0 %v646
    %682 = vmatprep.subr.bf16.mxu0 0
    %683 = vmatpush1.bf16.msra.mxu0 %v645
    %684 = vmatprep.subr.bf16.mxu0 0
    %685 = vmatpush1.bf16.msra.mxu0 %v644
    %686 = vmatprep.subr.bf16.mxu0 0
    %687 = vmatpush1.bf16.msra.mxu0 %v643
    %688 = vmatprep.subr.bf16.mxu0 0
    %689 = vmatpush1.bf16.msra.mxu0 %v642
    %690 = vmatprep.subr.bf16.mxu0 0
    %691 = vmatpush2.bf16.msra.mxu0 %v657
    %692 = vmatprep.subr.bf16.mxu0 0
    %693 = vmatpush2.bf16.msra.mxu0 %v656
    %694 = vmatprep.subr.bf16.mxu0 0
    %695 = vmatpush2.bf16.msra.mxu0 %v655
    %696 = vmatprep.subr.bf16.mxu0 0
    %697 = vmatpush2.bf16.msra.mxu0 %v654
    %698 = vmatprep.subr.bf16.mxu0 0
    %699 = vmatpush2.bf16.msra.mxu0 %v653
    %700 = vmatprep.subr.bf16.mxu0 0
    %701 = vmatpush2.bf16.msra.mxu0 %v652
    %702 = vmatprep.subr.bf16.mxu0 0
    %703 = vmatpush2.bf16.msra.mxu0 %v651
    %704 = vmatprep.subr.bf16.mxu0 0
    %705 = vmatpush2.bf16.msra.mxu0 %v650
    %706 = vmatprep.mubr.bf16.mxu0 %v508
    %707 = vmatmul.mubr.bf16.gmra.mxu0 %v507
    %v708 = vpop.f32.mrf.mxu0
    %v709 = vadd.f32 %v576, %v708
    %v710 = vpop.f32.mrf.mxu0
    %v711 = vpop.f32.mrf.mxu0
    %v712 = vadd.f32 %v576, %v711
    %v713 = vpop.f32.mrf.mxu0
    %714 = vmatprep.mubr.bf16.mxu0 %v510
    %715 = vmatmul.mubr.bf16.gmra.mxu0 %v509
    %v716 = vpop.f32.mrf.mxu0
    %v717 = vadd.f32 %v576, %v716
    %v718 = vpop.f32.mrf.mxu0
    %v719 = vpop.f32.mrf.mxu0
    %v720 = vadd.f32 %v576, %v719
    %v721 = vpop.f32.mrf.mxu0
    %722 = vmatprep.mubr.bf16.mxu0 %v512
    %723 = vmatmul.mubr.bf16.gmra.mxu0 %v511
    %v724 = vpop.f32.mrf.mxu0
    %v725 = vadd.f32 %v576, %v724
    %v726 = vpop.f32.mrf.mxu0
    %v727 = vpop.f32.mrf.mxu0
    %v728 = vadd.f32 %v576, %v727
    %v729 = vpop.f32.mrf.mxu0
    %730 = vmatprep.mubr.bf16.mxu0 %v514
    %731 = vmatmul.mubr.bf16.gmra.mxu0 %v513
    %v732 = vpop.f32.mrf.mxu0
    %v733 = vadd.f32 %v576, %v732
    %v734 = vpop.f32.mrf.mxu0
    %v735 = vpop.f32.mrf.mxu0
    %v736 = vadd.f32 %v576, %v735
    %v737 = vpop.f32.mrf.mxu0
    %738 = vmatprep.mubr.bf16.mxu0 %v516
    %739 = vmatmul.mubr.bf16.gmra.mxu0 %v515
    %v740 = vpop.f32.mrf.mxu0
    %v741 = vadd.f32 %v576, %v740
    %v742 = vpop.f32.mrf.mxu0
    %v743 = vpop.f32.mrf.mxu0
    %v744 = vadd.f32 %v576, %v743
    %v745 = vpop.f32.mrf.mxu0
    %746 = vmatprep.mubr.bf16.mxu0 %v518
    %747 = vmatmul.mubr.bf16.gmra.mxu0 %v517
    %v748 = vpop.f32.mrf.mxu0
    %v749 = vadd.f32 %v576, %v748
    %v750 = vpop.f32.mrf.mxu0
    %v751 = vpop.f32.mrf.mxu0
    %v752 = vadd.f32 %v576, %v751
    %v753 = vpop.f32.mrf.mxu0
    %754 = vmatprep.mubr.bf16.mxu0 %v520
    %755 = vmatmul.mubr.bf16.gmra.mxu0 %v519
    %v756 = vpop.f32.mrf.mxu0
    %v757 = vadd.f32 %v576, %v756
    %v758 = vpop.f32.mrf.mxu0
    %v759 = vpop.f32.mrf.mxu0
    %v760 = vadd.f32 %v576, %v759
    %v761 = vpop.f32.mrf.mxu0
    %762 = vmatprep.mubr.bf16.mxu0 %v522
    %763 = vmatmul.mubr.bf16.gmra.mxu0 %v521
    %v764 = vpop.f32.mrf.mxu0
    %v765 = vadd.f32 %v576, %v764
    %v766 = vpop.f32.mrf.mxu0
    %v767 = vpop.f32.mrf.mxu0
    %v768 = vadd.f32 %v576, %v767
    %v769 = vpop.f32.mrf.mxu0
    %770 = vmatprep.mubr.bf16.mxu0 %v524
    %771 = vmatmul.mubr.bf16.gmra.mxu0 %v523
    %v772 = vpop.f32.mrf.mxu0
    %v773 = vadd.f32 %v576, %v772
    %v774 = vpop.f32.mrf.mxu0
    %v775 = vpop.f32.mrf.mxu0
    %v776 = vadd.f32 %v576, %v775
    %v777 = vpop.f32.mrf.mxu0
    %778 = vmatprep.mubr.bf16.mxu0 %v526
    %779 = vmatmul.mubr.bf16.gmra.mxu0 %v525
    %v780 = vpop.f32.mrf.mxu0
    %v781 = vadd.f32 %v576, %v780
    %v782 = vpop.f32.mrf.mxu0
    %v783 = vpop.f32.mrf.mxu0
    %v784 = vadd.f32 %v576, %v783
    %v785 = vpop.f32.mrf.mxu0
    %786 = vmatprep.mubr.bf16.mxu0 %v528
    %787 = vmatmul.mubr.bf16.gmra.mxu0 %v527
    %v788 = vpop.f32.mrf.mxu0
    %v789 = vadd.f32 %v576, %v788
    %v790 = vpop.f32.mrf.mxu0
    %v791 = vpop.f32.mrf.mxu0
    %v792 = vadd.f32 %v576, %v791
    %v793 = vpop.f32.mrf.mxu0
    %794 = vmatprep.mubr.bf16.mxu0 %v530
    %795 = vmatmul.mubr.bf16.gmra.mxu0 %v529
    %v796 = vpop.f32.mrf.mxu0
    %v797 = vadd.f32 %v576, %v796
    %v798 = vpop.f32.mrf.mxu0
    %v799 = vpop.f32.mrf.mxu0
    %v800 = vadd.f32 %v576, %v799
    %v801 = vpop.f32.mrf.mxu0
    %802 = vmatprep.mubr.bf16.mxu0 %v532
    %803 = vmatmul.mubr.bf16.gmra.mxu0 %v531
    %v804 = vpop.f32.mrf.mxu0
    %v805 = vadd.f32 %v576, %v804
    %v806 = vpop.f32.mrf.mxu0
    %v807 = vpop.f32.mrf.mxu0
    %v808 = vadd.f32 %v576, %v807
    %v809 = vpop.f32.mrf.mxu0
    %810 = vmatprep.mubr.bf16.mxu0 %v534
    %811 = vmatmul.mubr.bf16.gmra.mxu0 %v533
    %v812 = vpop.f32.mrf.mxu0
    %v813 = vadd.f32 %v576, %v812
    %v814 = vpop.f32.mrf.mxu0
    %v815 = vpop.f32.mrf.mxu0
    %v816 = vadd.f32 %v576, %v815
    %v817 = vpop.f32.mrf.mxu0
    %818 = vmatprep.mubr.bf16.mxu0 %v536
    %819 = vmatmul.mubr.bf16.gmra.mxu0 %v535
    %v820 = vpop.f32.mrf.mxu0
    %v821 = vadd.f32 %v576, %v820
    %v822 = vpop.f32.mrf.mxu0
    %v823 = vpop.f32.mrf.mxu0
    %v824 = vadd.f32 %v576, %v823
    %v825 = vpop.f32.mrf.mxu0
    %826 = vmatprep.mubr.bf16.mxu0 %v538
    %827 = vmatmul.mubr.bf16.gmra.mxu0 %v537
    %v828 = vpop.f32.mrf.mxu0
    %v829 = vadd.f32 %v576, %v828
    %v830 = vpop.f32.mrf.mxu0
    %v831 = vpop.f32.mrf.mxu0
    %v832 = vadd.f32 %v576, %v831
    %v833 = vpop.f32.mrf.mxu0
    %834 = vdwg.mxu0
    %v835 = vmul.f32 %v709, 0.2
    %v836 = vmul.f32 %v712, 0.2
    %v837 = vmul.f32 %v717, 0.2
    %v838 = vmul.f32 %v720, 0.2
    %v839 = vmul.f32 %v725, 0.2
    %v840 = vmul.f32 %v728, 0.2
    %v841 = vmul.f32 %v733, 0.2
    %v842 = vmul.f32 %v736, 0.2
    %v843 = vmul.f32 %v741, 0.2
    %v844 = vmul.f32 %v744, 0.2
    %v845 = vmul.f32 %v749, 0.2
    %v846 = vmul.f32 %v752, 0.2
    %v847 = vmul.f32 %v757, 0.2
    %v848 = vmul.f32 %v760, 0.2
    %v849 = vmul.f32 %v765, 0.2
    %v850 = vmul.f32 %v768, 0.2
    %v851 = vmul.f32 %v773, 0.2
    %v852 = vmul.f32 %v776, 0.2
    %v853 = vmul.f32 %v781, 0.2
    %v854 = vmul.f32 %v784, 0.2
    %v855 = vmul.f32 %v789, 0.2
    %v856 = vmul.f32 %v792, 0.2
    %v857 = vmul.f32 %v797, 0.2
    %v858 = vmul.f32 %v800, 0.2
    %v859 = vmul.f32 %v805, 0.2
    %v860 = vmul.f32 %v808, 0.2
    %v861 = vmul.f32 %v813, 0.2
    %v862 = vmul.f32 %v816, 0.2
    %v863 = vmul.f32 %v821, 0.2
    %v864 = vmul.f32 %v824, 0.2
    %v865 = vmul.f32 %v829, 0.2
    %v866 = vmul.f32 %v832, 0.2
    %v867 = vmax.f32 %v709, %v835
    %v868 = vmax.f32 %v712, %v836
    %v869 = vmax.f32 %v717, %v837
    %v870 = vmax.f32 %v720, %v838
    %v871 = vmax.f32 %v725, %v839
    %v872 = vmax.f32 %v728, %v840
    %v873 = vmax.f32 %v733, %v841
    %v874 = vmax.f32 %v736, %v842
    %v875 = vmax.f32 %v741, %v843
    %v876 = vmax.f32 %v744, %v844
    %v877 = vmax.f32 %v749, %v845
    %v878 = vmax.f32 %v752, %v846
    %v879 = vmax.f32 %v757, %v847
    %v880 = vmax.f32 %v760, %v848
    %v881 = vmax.f32 %v765, %v849
    %v882 = vmax.f32 %v768, %v850
    %v883 = vmax.f32 %v773, %v851
    %v884 = vmax.f32 %v776, %v852
    %v885 = vmax.f32 %v781, %v853
    %v886 = vmax.f32 %v784, %v854
    %v887 = vmax.f32 %v789, %v855
    %v888 = vmax.f32 %v792, %v856
    %v889 = vmax.f32 %v797, %v857
    %v890 = vmax.f32 %v800, %v858
    %v891 = vmax.f32 %v805, %v859
    %v892 = vmax.f32 %v808, %v860
    %v893 = vmax.f32 %v813, %v861
    %v894 = vmax.f32 %v816, %v862
    %v895 = vmax.f32 %v821, %v863
    %v896 = vmax.f32 %v824, %v864
    %v897 = vmax.f32 %v829, %v865
    %v898 = vmax.f32 %v832, %v866
    %v899 = vld [vmem:[%s5] sm:$0x1]
    %v901 = vlaneseq
    %v902 = vshrl.u32 %v901, 7
    %v903 = vsub.s32 0, %v902
    %v904 = vrot.slane %v899, %v903
    %v906 = vmul.f32 %v867, %v904
    %v907 = vmul.f32 %v868, %v904
    %v908 = vmul.f32 %v869, %v904
    %v909 = vmul.f32 %v870, %v904
    %v910 = vmul.f32 %v871, %v904
    %v911 = vmul.f32 %v872, %v904
    %v912 = vmul.f32 %v873, %v904
    %v913 = vmul.f32 %v874, %v904
    %v914 = vmul.f32 %v875, %v904
    %v915 = vmul.f32 %v876, %v904
    %v916 = vmul.f32 %v877, %v904
    %v917 = vmul.f32 %v878, %v904
    %v918 = vmul.f32 %v879, %v904
    %v919 = vmul.f32 %v880, %v904
    %v920 = vmul.f32 %v881, %v904
    %v921 = vmul.f32 %v882, %v904
    %v922 = vmul.f32 %v883, %v904
    %v923 = vmul.f32 %v884, %v904
    %v924 = vmul.f32 %v885, %v904
    %v925 = vmul.f32 %v886, %v904
    %v926 = vmul.f32 %v887, %v904
    %v927 = vmul.f32 %v888, %v904
    %v928 = vmul.f32 %v889, %v904
    %v929 = vmul.f32 %v890, %v904
    %v930 = vmul.f32 %v891, %v904
    %v931 = vmul.f32 %v892, %v904
    %v932 = vmul.f32 %v893, %v904
    %v933 = vmul.f32 %v894, %v904
    %v934 = vmul.f32 %v895, %v904
    %v935 = vmul.f32 %v896, %v904
    %v936 = vmul.f32 %v897, %v904
    %v937 = vmul.f32 %v898, %v904
    %938 = vadd.xlane.f32.xlu0 %v906
    %v939 = vpop.xlane.xlu0 %938
    %940 = vadd.xlane.f32.xlu0 %v907
    %v941 = vpop.xlane.xlu0 %940
    %942 = vadd.xlane.f32.xlu0 %v908
    %v943 = vpop.xlane.xlu0 %942
    %944 = vadd.xlane.f32.xlu0 %v909
    %v945 = vpop.xlane.xlu0 %944
    %946 = vadd.xlane.f32.xlu0 %v910
    %v947 = vpop.xlane.xlu0 %946
    %948 = vadd.xlane.f32.xlu0 %v911
    %v949 = vpop.xlane.xlu0 %948
    %950 = vadd.xlane.f32.xlu0 %v912
    %v951 = vpop.xlane.xlu0 %950
    %952 = vadd.xlane.f32.xlu0 %v913
    %v953 = vpop.xlane.xlu0 %952
    %954 = vadd.xlane.f32.xlu0 %v914
    %v955 = vpop.xlane.xlu0 %954
    %956 = vadd.xlane.f32.xlu0 %v915
    %v957 = vpop.xlane.xlu0 %956
    %958 = vadd.xlane.f32.xlu0 %v916
    %v959 = vpop.xlane.xlu0 %958
    %960 = vadd.xlane.f32.xlu0 %v917
    %v961 = vpop.xlane.xlu0 %960
    %962 = vadd.xlane.f32.xlu0 %v918
    %v963 = vpop.xlane.xlu0 %962
    %964 = vadd.xlane.f32.xlu0 %v919
    %v965 = vpop.xlane.xlu0 %964
    %966 = vadd.xlane.f32.xlu0 %v920
    %v967 = vpop.xlane.xlu0 %966
    %968 = vadd.xlane.f32.xlu0 %v921
    %v969 = vpop.xlane.xlu0 %968
    %970 = vadd.xlane.f32.xlu0 %v922
    %v971 = vpop.xlane.xlu0 %970
    %972 = vadd.xlane.f32.xlu0 %v923
    %v973 = vpop.xlane.xlu0 %972
    %974 = vadd.xlane.f32.xlu0 %v924
    %v975 = vpop.xlane.xlu0 %974
    %976 = vadd.xlane.f32.xlu0 %v925
    %v977 = vpop.xlane.xlu0 %976
    %978 = vadd.xlane.f32.xlu0 %v926
    %v979 = vpop.xlane.xlu0 %978
    %980 = vadd.xlane.f32.xlu0 %v927
    %v981 = vpop.xlane.xlu0 %980
    %982 = vadd.xlane.f32.xlu0 %v928
    %v983 = vpop.xlane.xlu0 %982
    %984 = vadd.xlane.f32.xlu0 %v929
    %v985 = vpop.xlane.xlu0 %984
    %986 = vadd.xlane.f32.xlu0 %v930
    %v987 = vpop.xlane.xlu0 %986
    %988 = vadd.xlane.f32.xlu0 %v931
    %v989 = vpop.xlane.xlu0 %988
    %990 = vadd.xlane.f32.xlu0 %v932
    %v991 = vpop.xlane.xlu0 %990
    %992 = vadd.xlane.f32.xlu0 %v933
    %v993 = vpop.xlane.xlu0 %992
    %994 = vadd.xlane.f32.xlu0 %v934
    %v995 = vpop.xlane.xlu0 %994
    %996 = vadd.xlane.f32.xlu0 %v935
    %v997 = vpop.xlane.xlu0 %996
    %998 = vadd.xlane.f32.xlu0 %v936
    %v999 = vpop.xlane.xlu0 %998
    %1000 = vadd.xlane.f32.xlu0 %v937
    %v1001 = vpop.xlane.xlu0 %1000
    %v1002 = vld [vmem:[#allocation2] sm:$0x1]
    %v1004 = vlaneseq
    %v1005 = vshrl.u32 %v1004, 7
    %v1006 = vsub.s32 0, %v1005
    %v1007 = vrot.slane %v1002, %v1006
    %v1009 = vadd.f32 %v939, %v1007
    %v1010 = vadd.f32 %v941, %v1007
    %v1011 = vadd.f32 %v943, %v1007
    %v1012 = vadd.f32 %v945, %v1007
    %v1013 = vadd.f32 %v947, %v1007
    %v1014 = vadd.f32 %v949, %v1007
    %v1015 = vadd.f32 %v951, %v1007
    %v1016 = vadd.f32 %v953, %v1007
    %v1017 = vadd.f32 %v955, %v1007
    %v1018 = vadd.f32 %v957, %v1007
    %v1019 = vadd.f32 %v959, %v1007
    %v1020 = vadd.f32 %v961, %v1007
    %v1021 = vadd.f32 %v963, %v1007
    %v1022 = vadd.f32 %v965, %v1007
    %v1023 = vadd.f32 %v967, %v1007
    %v1024 = vadd.f32 %v969, %v1007
    %v1025 = vadd.f32 %v971, %v1007
    %v1026 = vadd.f32 %v973, %v1007
    %v1027 = vadd.f32 %v975, %v1007
    %v1028 = vadd.f32 %v977, %v1007
    %v1029 = vadd.f32 %v979, %v1007
    %v1030 = vadd.f32 %v981, %v1007
    %v1031 = vadd.f32 %v983, %v1007
    %v1032 = vadd.f32 %v985, %v1007
    %v1033 = vadd.f32 %v987, %v1007
    %v1034 = vadd.f32 %v989, %v1007
    %v1035 = vadd.f32 %v991, %v1007
    %v1036 = vadd.f32 %v993, %v1007
    %v1037 = vadd.f32 %v995, %v1007
    %v1038 = vadd.f32 %v997, %v1007
    %v1039 = vadd.f32 %v999, %v1007
    %v1040 = vadd.f32 %v1001, %v1007
    %v1041 = vmul.f32 %v1009, 0.5
    %v1042 = vmul.f32 %v1010, 0.5
    %v1043 = vmul.f32 %v1011, 0.5
    %v1044 = vmul.f32 %v1012, 0.5
    %v1045 = vmul.f32 %v1013, 0.5
    %v1046 = vmul.f32 %v1014, 0.5
    %v1047 = vmul.f32 %v1015, 0.5
    %v1048 = vmul.f32 %v1016, 0.5
    %v1049 = vmul.f32 %v1017, 0.5
    %v1050 = vmul.f32 %v1018, 0.5
    %v1051 = vmul.f32 %v1019, 0.5
    %v1052 = vmul.f32 %v1020, 0.5
    %v1053 = vmul.f32 %v1021, 0.5
    %v1054 = vmul.f32 %v1022, 0.5
    %v1055 = vmul.f32 %v1023, 0.5
    %v1056 = vmul.f32 %v1024, 0.5
    %v1057 = vmul.f32 %v1025, 0.5
    %v1058 = vmul.f32 %v1026, 0.5
    %v1059 = vmul.f32 %v1027, 0.5
    %v1060 = vmul.f32 %v1028, 0.5
    %v1061 = vmul.f32 %v1029, 0.5
    %v1062 = vmul.f32 %v1030, 0.5
    %v1063 = vmul.f32 %v1031, 0.5
    %v1064 = vmul.f32 %v1032, 0.5
    %v1065 = vmul.f32 %v1033, 0.5
    %v1066 = vmul.f32 %v1034, 0.5
    %v1067 = vmul.f32 %v1035, 0.5
    %v1068 = vmul.f32 %v1036, 0.5
    %v1069 = vmul.f32 %v1037, 0.5
    %v1070 = vmul.f32 %v1038, 0.5
    %v1071 = vmul.f32 %v1039, 0.5
    %v1072 = vmul.f32 %v1040, 0.5
    %v1073 = vtanh.pop %v1041
    %v1074 = vtanh.pop %v1042
    %v1075 = vtanh.pop %v1043
    %v1076 = vtanh.pop %v1044
    %v1077 = vtanh.pop %v1045
    %v1078 = vtanh.pop %v1046
    %v1079 = vtanh.pop %v1047
    %v1080 = vtanh.pop %v1048
    %v1081 = vtanh.pop %v1049
    %v1082 = vtanh.pop %v1050
    %v1083 = vtanh.pop %v1051
    %v1084 = vtanh.pop %v1052
    %v1085 = vtanh.pop %v1053
    %v1086 = vtanh.pop %v1054
    %v1087 = vtanh.pop %v1055
    %v1088 = vtanh.pop %v1056
    %v1089 = vtanh.pop %v1057
    %v1090 = vtanh.pop %v1058
    %v1091 = vtanh.pop %v1059
    %v1092 = vtanh.pop %v1060
    %v1093 = vtanh.pop %v1061
    %v1094 = vtanh.pop %v1062
    %v1095 = vtanh.pop %v1063
    %v1096 = vtanh.pop %v1064
    %v1097 = vtanh.pop %v1065
    %v1098 = vtanh.pop %v1066
    %v1099 = vtanh.pop %v1067
    %v1100 = vtanh.pop %v1068
    %v1101 = vtanh.pop %v1069
    %v1102 = vtanh.pop %v1070
    %v1103 = vtanh.pop %v1071
    %v1104 = vtanh.pop %v1072
    %v1105 = vadd.f32 %v1073, 1.0
    %v1106 = vadd.f32 %v1074, 1.0
    %v1107 = vadd.f32 %v1075, 1.0
    %v1108 = vadd.f32 %v1076, 1.0
    %v1109 = vadd.f32 %v1077, 1.0
    %v1110 = vadd.f32 %v1078, 1.0
    %v1111 = vadd.f32 %v1079, 1.0
    %v1112 = vadd.f32 %v1080, 1.0
    %v1113 = vadd.f32 %v1081, 1.0
    %v1114 = vadd.f32 %v1082, 1.0
    %v1115 = vadd.f32 %v1083, 1.0
    %v1116 = vadd.f32 %v1084, 1.0
    %v1117 = vadd.f32 %v1085, 1.0
    %v1118 = vadd.f32 %v1086, 1.0
    %v1119 = vadd.f32 %v1087, 1.0
    %v1120 = vadd.f32 %v1088, 1.0
    %v1121 = vadd.f32 %v1089, 1.0
    %v1122 = vadd.f32 %v1090, 1.0
    %v1123 = vadd.f32 %v1091, 1.0
    %v1124 = vadd.f32 %v1092, 1.0
    %v1125 = vadd.f32 %v1093, 1.0
    %v1126 = vadd.f32 %v1094, 1.0
    %v1127 = vadd.f32 %v1095, 1.0
    %v1128 = vadd.f32 %v1096, 1.0
    %v1129 = vadd.f32 %v1097, 1.0
    %v1130 = vadd.f32 %v1098, 1.0
    %v1131 = vadd.f32 %v1099, 1.0
    %v1132 = vadd.f32 %v1100, 1.0
    %v1133 = vadd.f32 %v1101, 1.0
    %v1134 = vadd.f32 %v1102, 1.0
    %v1135 = vadd.f32 %v1103, 1.0
    %v1136 = vadd.f32 %v1104, 1.0
    %v1137 = vmul.f32 %v1105, 0.5
    %v1138 = vmul.f32 %v1106, 0.5
    %v1139 = vmul.f32 %v1107, 0.5
    %v1140 = vmul.f32 %v1108, 0.5
    %v1141 = vmul.f32 %v1109, 0.5
    %v1142 = vmul.f32 %v1110, 0.5
    %v1143 = vmul.f32 %v1111, 0.5
    %v1144 = vmul.f32 %v1112, 0.5
    %v1145 = vmul.f32 %v1113, 0.5
    %v1146 = vmul.f32 %v1114, 0.5
    %v1147 = vmul.f32 %v1115, 0.5
    %v1148 = vmul.f32 %v1116, 0.5
    %v1149 = vmul.f32 %v1117, 0.5
    %v1150 = vmul.f32 %v1118, 0.5
    %v1151 = vmul.f32 %v1119, 0.5
    %v1152 = vmul.f32 %v1120, 0.5
    %v1153 = vmul.f32 %v1121, 0.5
    %v1154 = vmul.f32 %v1122, 0.5
    %v1155 = vmul.f32 %v1123, 0.5
    %v1156 = vmul.f32 %v1124, 0.5
    %v1157 = vmul.f32 %v1125, 0.5
    %v1158 = vmul.f32 %v1126, 0.5
    %v1159 = vmul.f32 %v1127, 0.5
    %v1160 = vmul.f32 %v1128, 0.5
    %v1161 = vmul.f32 %v1129, 0.5
    %v1162 = vmul.f32 %v1130, 0.5
    %v1163 = vmul.f32 %v1131, 0.5
    %v1164 = vmul.f32 %v1132, 0.5
    %v1165 = vmul.f32 %v1133, 0.5
    %v1166 = vmul.f32 %v1134, 0.5
    %v1167 = vmul.f32 %v1135, 0.5
    %v1168 = vmul.f32 %v1136, 0.5
    %vm1169 = vcmask 7168
    %1170 = vst.msk [vmem:[#allocation3] sm:$0xff] %vm1169, %v1137
    %1171 = vst.msk [vmem:[#allocation3 + $0x8] sm:$0xff] %vm1169, %v1138
    %1172 = vst.msk [vmem:[#allocation3 + $0x10] sm:$0xff] %vm1169, %v1139
    %1173 = vst.msk [vmem:[#allocation3 + $0x18] sm:$0xff] %vm1169, %v1140
    %1174 = vst.msk [vmem:[#allocation3 + $0x20] sm:$0xff] %vm1169, %v1141
    %1175 = vst.msk [vmem:[#allocation3 + $0x28] sm:$0xff] %vm1169, %v1142
    %1176 = vst.msk [vmem:[#allocation3 + $0x30] sm:$0xff] %vm1169, %v1143
    %1177 = vst.msk [vmem:[#allocation3 + $0x38] sm:$0xff] %vm1169, %v1144
    %1178 = vst.msk [vmem:[#allocation3 + $0x40] sm:$0xff] %vm1169, %v1145
    %1179 = vst.msk [vmem:[#allocation3 + $0x48] sm:$0xff] %vm1169, %v1146
    %1180 = vst.msk [vmem:[#allocation3 + $0x50] sm:$0xff] %vm1169, %v1147
    %1181 = vst.msk [vmem:[#allocation3 + $0x58] sm:$0xff] %vm1169, %v1148
    %1182 = vst.msk [vmem:[#allocation3 + $0x60] sm:$0xff] %vm1169, %v1149
    %1183 = vst.msk [vmem:[#allocation3 + $0x68] sm:$0xff] %vm1169, %v1150
    %1184 = vst.msk [vmem:[#allocation3 + $0x70] sm:$0xff] %vm1169, %v1151
    %1185 = vst.msk [vmem:[#allocation3 + $0x78] sm:$0xff] %vm1169, %v1152
    %1186 = vst.msk [vmem:[#allocation3 + $0x80] sm:$0xff] %vm1169, %v1153
    %1187 = vst.msk [vmem:[#allocation3 + $0x88] sm:$0xff] %vm1169, %v1154
    %1188 = vst.msk [vmem:[#allocation3 + $0x90] sm:$0xff] %vm1169, %v1155
    %1189 = vst.msk [vmem:[#allocation3 + $0x98] sm:$0xff] %vm1169, %v1156
    %1190 = vst.msk [vmem:[#allocation3 + $0xa0] sm:$0xff] %vm1169, %v1157
    %1191 = vst.msk [vmem:[#allocation3 + $0xa8] sm:$0xff] %vm1169, %v1158
    %1192 = vst.msk [vmem:[#allocation3 + $0xb0] sm:$0xff] %vm1169, %v1159
    %1193 = vst.msk [vmem:[#allocation3 + $0xb8] sm:$0xff] %vm1169, %v1160
    %1194 = vst.msk [vmem:[#allocation3 + $0xc0] sm:$0xff] %vm1169, %v1161
    %1195 = vst.msk [vmem:[#allocation3 + $0xc8] sm:$0xff] %vm1169, %v1162
    %1196 = vst.msk [vmem:[#allocation3 + $0xd0] sm:$0xff] %vm1169, %v1163
    %1197 = vst.msk [vmem:[#allocation3 + $0xd8] sm:$0xff] %vm1169, %v1164
    %1198 = vst.msk [vmem:[#allocation3 + $0xe0] sm:$0xff] %vm1169, %v1165
    %1199 = vst.msk [vmem:[#allocation3 + $0xe8] sm:$0xff] %vm1169, %v1166
    %1200 = vst.msk [vmem:[#allocation3 + $0xf0] sm:$0xff] %vm1169, %v1167
    %1201 = vst.msk [vmem:[#allocation3 + $0xf8] sm:$0xff] %vm1169, %v1168
    // Predicated region
    $region30: #{discriminator_forward.1} parent=1 // pred_check
      _
    $region31: #{discriminator_forward.1} parent=1 // pred_check_branch
      %1203 = sbr.rel (0) target = $region33
    $region32: #{discriminator_forward.1} parent=1 // pred_region
      // Predicated region
      $region34: #{discriminator_forward.1} parent=32 // pred_check
        _
      $region35: #{discriminator_forward.1} parent=32 // pred_check_branch
        %1205 = sbr.rel (0) target = $region37
      $region36: #{discriminator_forward.1} parent=32 // pred_region
        // Predicated region
        $region38: #{discriminator_forward.1} parent=36 // pred_check
          _
        $region39: #{discriminator_forward.1} parent=36 // pred_check_branch
          %1207 = sbr.rel (0) target = $region41
        $region40: #{discriminator_forward.1} parent=36 // pred_region
          // Predicated region
          $region53: #{discriminator_forward.1} parent=40 // pred_check
            _
          $region54: #{discriminator_forward.1} parent=40 // pred_check_branch
            %1223 = sbr.rel (0) target = $region56
          $region55: #{discriminator_forward.1} parent=40 // pred_region
            loop: start=0, step=1, limit=1
            $region57: #{discriminator_forward.1} parent=55 // loop_pre_header
              _
            $region58: #{discriminator_forward.1} parent=55 // loop_header
              %s1225 = sphi 0, %s1229
              %p1226 = scmp.ge.s32.totalorder %s1225, 1
              %s1230 = sphi [#allocation3], [#allocation3]
              %s1231 = sphi %s7, %s7
            $region59: #{discriminator_forward.1} parent=55 // loop_header_branch
              %1228 = sbr.rel (%p1226) target = $region63
            $region60: #{discriminator_forward.1} parent=55 // loop_body
              %v1232 = vld [vmem:[%s1230] sm:$0xff]
              %1233 = vst [vmem:[%s1231] sm:$0xff] %v1232
            $region61: #{discriminator_forward.1} parent=55 // loop_footer
              %s1229 = sadd.s32 1, %s1225
            $region62: #{discriminator_forward.1} parent=55 // loop_footer_branch
              %1224 = sbr.rel target = $region58
            $region63: #{discriminator_forward.1} parent=55 // loop_exit
              _
          $region56: #{discriminator_forward.1} parent=40 // pred_fallthru
            _
          // Predicated region
          $region64: #{discriminator_forward.1} parent=40 // pred_check
            _
          $region65: #{discriminator_forward.1} parent=40 // pred_check_branch
            %1235 = sbr.rel target = $region67
          $region66: #{discriminator_forward.1} parent=40 // pred_region
            _
          $region67: #{discriminator_forward.1} parent=40 // pred_fallthru
            _
        $region41: #{discriminator_forward.1} parent=36 // pred_fallthru
          _
        // Predicated region
        $region42: #{discriminator_forward.1} parent=36 // pred_check
          _
        $region43: #{discriminator_forward.1} parent=36 // pred_check_branch
          %1209 = sbr.rel target = $region45
        $region44: #{discriminator_forward.1} parent=36 // pred_region
          %s1211 = ssub.s32 256, 1
          loop: start=0, step=1, limit=1
          $region46: #{discriminator_forward.1} parent=44 // loop_pre_header
            _
          $region47: #{discriminator_forward.1} parent=44 // loop_header
            %s1213 = sphi 0, %s1217
            %p1214 = scmp.ge.s32.totalorder %s1213, 1
            %s1218 = sphi [#allocation3], [#allocation3]
            %s1219 = sphi %s7, %s7
          $region48: #{discriminator_forward.1} parent=44 // loop_header_branch
            %1216 = sbr.rel (%p1214) target = $region52
          $region49: #{discriminator_forward.1} parent=44 // loop_body
            %v1220 = vld [vmem:[%s1218] sm:%s1211]
            %1221 = vst [vmem:[%s1219] sm:%s1211] %v1220
          $region50: #{discriminator_forward.1} parent=44 // loop_footer
            %s1217 = sadd.s32 1, %s1213
          $region51: #{discriminator_forward.1} parent=44 // loop_footer_branch
            %1212 = sbr.rel target = $region47
          $region52: #{discriminator_forward.1} parent=44 // loop_exit
            _
        $region45: #{discriminator_forward.1} parent=36 // pred_fallthru
          _
      $region37: #{discriminator_forward.1} parent=32 // pred_fallthru
        _
      %1236 = vnop
    $region33: #{discriminator_forward.1} parent=1 // pred_fallthru
      _
    // Predicated region
    $region68: #{discriminator_forward.1} parent=1 // pred_check
      _
    $region69: #{discriminator_forward.1} parent=1 // pred_check_branch
      %1238 = sbr.rel (0) target = $region71
    $region70: #{discriminator_forward.1} parent=1 // pred_region
      _
    $region71: #{discriminator_forward.1} parent=1 // pred_fallthru
      _

</llo_original>
